<compile_context>
chip_gen: v7x
topology: tpu7x:2x2x1
jax: 0.10.0
libtpu: 0.0.40
codegen_flags: <defaults>
</compile_context>

<pallas_src>
import math
import jax
import jax.numpy as jnp
import numpy as np
from jax.experimental import pallas as pl
from jax.experimental.pallas import tpu as pltpu  # noqa: F401  (TPU backend)


# ---------------- config (mirrors the PyTorch config object) ----------------
HIDDEN_DIM = 32
HEAD_NUM = 4
HEAD_DIM = HIDDEN_DIM // HEAD_NUM
DROPOUT_RATE = 0.1   # nn.Dropout is identity in eval mode
# TODO(synk): training-mode dropout on the attention probabilities is not
#             implemented (eval-mode identity is used, matching model.eval()).

B = 2     # batch
LQ = 8    # query length
LK = 8    # key / value length


# ------------------------------- Pallas kernel ------------------------------
def mha_kernel(x_ref, mask_ref, wqkv_ref, bqkv_ref, sel_ref, wm_ref, bm_ref,
               out_ref):
    H, D = HEAD_NUM, HIDDEN_DIM
    RQ = B * LQ            # stacked query rows
    RK = B * LK            # stacked key/value rows

    # (1) ONE wide fused QKV projection: (48,32) @ (32,96) -- a single MXU
    #     push.  Columns are packed [q*scale | k | v], heads contiguous
    #     (HEAD_DIM lanes each) inside every 32-lane block.
    y = jnp.dot(x_ref[...], wqkv_ref[...],
                preferred_element_type=jnp.float32) + bqkv_ref[...]

    # Row split on 8-aligned sublanes (0:16 / 16:32 / 32:48); the q/k/v column
    # split is three 32-lane block slices (offsets 0 / 32 / 64).
    q2d = y[0:RQ, 0:D]                           # (16, 32) pre-scaled queries
    k2d = y[RQ:RQ + RK, D:2 * D]                 # (16, 32)
    v2d = y[RQ + RK:RQ + 2 * RK, 2 * D:3 * D]    # (16, 32)

    # (2) Per-head scores WITHOUT per-head lane slices or lane reshapes:
    #     a 0/1 head selector (H,1,D) zeroes the other heads' features of K,
    #     so the batched contraction over all 32 features yields exact
    #     per-head scores (extra MXU flops are free; still 4 pushes, same as
    #     a dh=8 head-batched einsum, but nothing sits on the XLU).
    sel = sel_ref[...]                                        # (H, 1, D)
    qb = jnp.broadcast_to(q2d[None], (H, RQ, D))              # (H, RQ, D)
    km = k2d[None] * sel                                      # (H, RK, D)
    s = jnp.einsum('hqc,hkc->hqk', qb, km,
                   preferred_element_type=jnp.float32)        # (H, RQ, RK)

    # Additive mask removes masked keys AND cross-batch (query, key) pairs
    # exactly (exp underflows to 0 in f32 after the row-max subtraction).
    s = s + mask_ref[...]
    # Row-max kept for exact-softmax semantics: dropping it (optional
    # micro-opt) is only safe under a documented |score| < ~88 bound.
    s = s - jnp.max(s, axis=-1, keepdims=True)
    p = jnp.exp(s)
    attn = p * pl.reciprocal(jnp.sum(p, axis=-1, keepdims=True), approx=True)
    # TODO(synk): dropout on `attn` omitted (eval mode).

    # (3) Context: head-masked V keeps each head's contribution in its own
    #     8-lane block, so summing over heads lands directly in the flat
    #     concat-of-heads layout (RQ, D) -- no (H,q,d)->(q,H*d) relayout.
    vm = v2d[None] * sel                                      # (H, RK, D)
    ctx = jnp.sum(jnp.einsum('hqk,hkc->hqc', attn, vm,
                             preferred_element_type=jnp.float32),
                  axis=0)                                     # (RQ, D)

    # (4) Merge projection as ONE K=32 matmul.
    out_ref[...] = jnp.dot(ctx, wm_ref[...],
                           preferred_element_type=jnp.float32) + bm_ref[...]


# ---------------- one-time packing (hoisted out of the call path) -----------
def pack_params(params):
    """Host/one-time weight packing: fused QKV weight, scale folding, selector."""
    wq, bq, wk, bk, wv, bv, wm, bm = params
    scale = 1.0 / math.sqrt(HEAD_DIM)
    wqkv = jnp.concatenate([wq * scale, wk, wv], axis=1)        # (D, 3D)
    bqkv = jnp.concatenate([bq * scale, bk, bv], axis=1)        # (1, 3D)
    # 0/1 head selector: sel[h, 0, c] = 1 iff feature column c belongs to head h
    sel = (jnp.arange(HIDDEN_DIM)[None, :] // HEAD_DIM
           == jnp.arange(HEAD_NUM)[:, None]).astype(jnp.float32)
    sel = sel.reshape(HEAD_NUM, 1, HIDDEN_DIM)                  # (H, 1, D)
    return wqkv, bqkv, sel, wm, bm


def pack_mask(val_mask):
    """One-time additive mask over folded rows: 0 where attention is allowed,
    -1e9 on masked keys and on cross-batch (query, key) pairs."""
    RQ, RK = B * LQ, B * LK
    q_batch = jnp.repeat(jnp.arange(B), LQ)                     # (RQ,)
    k_batch = jnp.repeat(jnp.arange(B), LK)                     # (RK,)
    allowed = (q_batch[:, None] == k_batch[None, :]) \
        & ~val_mask.reshape(RK)[None, :]
    return jnp.where(allowed, 0.0, -1e9).astype(jnp.float32)[None]   # (1,RQ,RK)


# --------------------------------- wrapper ----------------------------------
@jax.jit
def mha_attn(qry, key, val, mask_add, wqkv, bqkv, sel, wm, bm):
    D = HIDDEN_DIM
    RQ, RK = B * LQ, B * LK
    # Row-stacked activations [qry; key; val]; reshapes are free bitcasts.
    x_all = jnp.concatenate([qry.reshape(RQ, D),
                             key.reshape(RK, D),
                             val.reshape(RK, D)], axis=0)       # (RQ+2*RK, D)
    out_flat = pl.pallas_call(
        mha_kernel,
        out_shape=jax.ShapeDtypeStruct((RQ, D), jnp.float32),
    )(x_all, mask_add, wqkv, bqkv, sel, wm, bm)
    return out_flat.reshape(B, LQ, D)


# --------------------------- pure-JAX reference -----------------------------
def mha_ref(qry, key, val, val_mask, params):
    wq, bq, wk, bk, wv, bv, wm, bm = params

    def split_heads(x):  # (B, L, D) -> (B, H, L, dh)
        return x.reshape(B, -1, HEAD_NUM, HEAD_DIM).transpose(0, 2, 1, 3)

    Q = split_heads(qry @ wq + bq)
    K = split_heads(key @ wk + bk)
    V = split_heads(val @ wv + bv)
    scores = jnp.einsum("bhqd,bhkd->bhqk", Q, K) / math.sqrt(HEAD_DIM)
    scores = jnp.where(val_mask[:, None, None, :], -1e9, scores)
    attn = jax.nn.softmax(scores, axis=-1)
    ctx = jnp.einsum("bhqk,bhkd->bhqd", attn, V)
    ctx = ctx.transpose(0, 2, 1, 3).reshape(B, -1, HIDDEN_DIM)
    return ctx @ wm + bm


# ----------------------------------- main ------------------------------------
if __name__ == "__main__":
    root = jax.random.PRNGKey(0)
    keys = jax.random.split(root, 16)
    D = HIDDEN_DIM
    bound = 1.0 / math.sqrt(D)   # nn.Linear default init range

    def lin_params(kw, kb):
        # stored input-major (in, out): y = x @ W + b  (== torch x @ W.T + b)
        W = jax.random.uniform(kw, (D, D), jnp.float32, -bound, bound)
        b = jax.random.uniform(kb, (1, D), jnp.float32, -bound, bound)
        return W, b

    wq, bq = lin_params(keys[0], keys[1])
    wk, bk = lin_params(keys[2], keys[3])
    wv, bv = lin_params(keys[4], keys[5])
    wm, bm = lin_params(keys[6], keys[7])
    params = (wq, bq, wk, bk, wv, bv, wm, bm)

    qry = jax.random.normal(keys[8], (B, LQ, D), jnp.float32)
    key = jax.random.normal(keys[9], (B, LK, D), jnp.float32)
    val = jax.random.normal(keys[10], (B, LK, D), jnp.float32)
    # boolean mask, True = masked-out key positions (last two per batch)
    val_mask = jnp.zeros((B, LK), jnp.bool_).at[:, LK - 2:].set(True)

    # One-time packing (hoisted out of the measured per-call path).
    wqkv, bqkv, sel, wm_p, bm_p = pack_params(params)
    mask_add = pack_mask(val_mask)

    out = jax.block_until_ready(
        mha_attn(qry, key, val, mask_add, wqkv, bqkv, sel, wm_p, bm_p))

    ref = mha_ref(qry, key, val, val_mask, params)
    # Tolerance covers the EUP approximate reciprocal used for the softmax
    # denominator and the default-precision (bf16-pass) MXU matmuls.
    np.testing.assert_allclose(np.asarray(out), np.asarray(ref),
                               rtol=2e-3, atol=2e-3)
    print("KERNEL_OK")
</pallas_src>

<mosaic_0001>
module attributes {stable_mosaic.version = 11 : i64} {
  func.func @mha_kernel(%arg0: memref<48x32xf32, #tpu.memory_space<vmem>>, %arg1: memref<1x16x16xf32, #tpu.memory_space<vmem>>, %arg2: memref<32x96xf32, #tpu.memory_space<vmem>>, %arg3: memref<1x96xf32, #tpu.memory_space<vmem>>, %arg4: memref<4x1x32xf32, #tpu.memory_space<vmem>>, %arg5: memref<32x32xf32, #tpu.memory_space<vmem>>, %arg6: memref<1x32xf32, #tpu.memory_space<vmem>>, %arg7: memref<16x32xf32, #tpu.memory_space<vmem>>) attributes {dimension_semantics = [], scalar_prefetch = 0 : i64, scratch_operands = 0 : i64, tpu.core_type = #tpu.core_type<tc>} {
    %c0 = arith.constant 0 : index
    %c0_0 = arith.constant 0 : index
    %0 = vector.load %arg0[%c0, %c0_0] : memref<48x32xf32, #tpu.memory_space<vmem>>, vector<48x32xf32>
    %c0_1 = arith.constant 0 : index
    %c0_2 = arith.constant 0 : index
    %1 = vector.load %arg2[%c0_1, %c0_2] : memref<32x96xf32, #tpu.memory_space<vmem>>, vector<32x96xf32>
    %cst = arith.constant dense<0.000000e+00> : vector<48x96xf32>
    %2 = tpu.matmul %0, %1, %cst {dimension_numbers = #tpu.dot_dimension_numbers<[1], [0], [0], [1], [0, 0, 1, 1], [], []>} : vector<48x32xf32>, vector<32x96xf32>, vector<48x96xf32> -> vector<48x96xf32>
    %c0_3 = arith.constant 0 : index
    %c0_4 = arith.constant 0 : index
    %3 = vector.load %arg3[%c0_3, %c0_4] : memref<1x96xf32, #tpu.memory_space<vmem>>, vector<1x96xf32>
    %4 = vector.broadcast %3 : vector<1x96xf32> to vector<48x96xf32>
    %5 = arith.addf %2, %4 : vector<48x96xf32>
    %6 = vector.extract_strided_slice %5 {offsets = [0, 0], sizes = [16, 32], strides = [1, 1]} : vector<48x96xf32> to vector<16x32xf32>
    %7 = vector.extract_strided_slice %5 {offsets = [16, 32], sizes = [16, 32], strides = [1, 1]} : vector<48x96xf32> to vector<16x32xf32>
    %8 = vector.extract_strided_slice %5 {offsets = [32, 64], sizes = [16, 32], strides = [1, 1]} : vector<48x96xf32> to vector<16x32xf32>
    %c0_5 = arith.constant 0 : index
    %c0_6 = arith.constant 0 : index
    %c0_7 = arith.constant 0 : index
    %9 = vector.load %arg4[%c0_5, %c0_6, %c0_7] : memref<4x1x32xf32, #tpu.memory_space<vmem>>, vector<4x1x32xf32>
    %10 = vector.shape_cast %6 : vector<16x32xf32> to vector<1x16x32xf32>
    %11 = vector.shape_cast %10 : vector<1x16x32xf32> to vector<1x16x32xf32>
    %12 = vector.broadcast %11 : vector<1x16x32xf32> to vector<4x16x32xf32>
    %13 = vector.shape_cast %7 : vector<16x32xf32> to vector<1x16x32xf32>
    %14 = vector.broadcast %13 : vector<1x16x32xf32> to vector<4x16x32xf32>
    %15 = vector.broadcast %9 : vector<4x1x32xf32> to vector<4x16x32xf32>
    %16 = arith.mulf %14, %15 : vector<4x16x32xf32>
    "tpu.trace_start"() <{level = 10 : i32, message = "hqc,hkc->hqk"}> : () -> ()
    %cst_8 = arith.constant dense<0.000000e+00> : vector<4x16x16xf32>
    %17 = tpu.matmul %12, %16, %cst_8 {dimension_numbers = #tpu.dot_dimension_numbers<[2], [2], [1], [1], [0, 0, 0, 1, 1, 1], [0], [0]>} : vector<4x16x32xf32>, vector<4x16x32xf32>, vector<4x16x16xf32> -> vector<4x16x16xf32>
    "tpu.trace_stop"() : () -> ()
    %c0_9 = arith.constant 0 : index
    %c0_10 = arith.constant 0 : index
    %c0_11 = arith.constant 0 : index
    %18 = vector.load %arg1[%c0_9, %c0_10, %c0_11] : memref<1x16x16xf32, #tpu.memory_space<vmem>>, vector<1x16x16xf32>
    %19 = vector.broadcast %18 : vector<1x16x16xf32> to vector<4x16x16xf32>
    %20 = arith.addf %17, %19 : vector<4x16x16xf32>
    %cst_12 = arith.constant dense<0xFF800000> : vector<4x16xf32>
    %21 = vector.multi_reduction <maximumf>, %20, %cst_12 [2] : vector<4x16x16xf32> to vector<4x16xf32>
    %22 = vector.shape_cast %21 : vector<4x16xf32> to vector<4x16x1xf32>
    %23 = vector.broadcast %22 : vector<4x16x1xf32> to vector<4x16x16xf32>
    %24 = arith.subf %20, %23 : vector<4x16x16xf32>
    %25 = math.exp %24 : vector<4x16x16xf32>
    %cst_13 = arith.constant dense<0.000000e+00> : vector<4x16xf32>
    %26 = vector.multi_reduction <add>, %25, %cst_13 [2] : vector<4x16x16xf32> to vector<4x16xf32>
    %27 = vector.shape_cast %26 : vector<4x16xf32> to vector<4x16x1xf32>
    %28 = tpu.reciprocal %27 {approx = true} : vector<4x16x1xf32> -> vector<4x16x1xf32>
    %29 = vector.broadcast %28 : vector<4x16x1xf32> to vector<4x16x16xf32>
    %30 = arith.mulf %25, %29 : vector<4x16x16xf32>
    %31 = vector.shape_cast %8 : vector<16x32xf32> to vector<1x16x32xf32>
    %32 = vector.broadcast %31 : vector<1x16x32xf32> to vector<4x16x32xf32>
    %33 = vector.broadcast %9 : vector<4x1x32xf32> to vector<4x16x32xf32>
    %34 = arith.mulf %32, %33 : vector<4x16x32xf32>
    "tpu.trace_start"() <{level = 10 : i32, message = "hqk,hkc->hqc"}> : () -> ()
    %cst_14 = arith.constant dense<0.000000e+00> : vector<4x16x32xf32>
    %35 = tpu.matmul %30, %34, %cst_14 {dimension_numbers = #tpu.dot_dimension_numbers<[2], [1], [1], [2], [0, 0, 0, 1, 1, 2], [0], [0]>} : vector<4x16x16xf32>, vector<4x16x32xf32>, vector<4x16x32xf32> -> vector<4x16x32xf32>
    "tpu.trace_stop"() : () -> ()
    %cst_15 = arith.constant dense<0.000000e+00> : vector<16x32xf32>
    %36 = vector.multi_reduction <add>, %35, %cst_15 [0] : vector<4x16x32xf32> to vector<16x32xf32>
    %c0_16 = arith.constant 0 : index
    %c0_17 = arith.constant 0 : index
    %37 = vector.load %arg5[%c0_16, %c0_17] : memref<32x32xf32, #tpu.memory_space<vmem>>, vector<32x32xf32>
    %cst_18 = arith.constant dense<0.000000e+00> : vector<16x32xf32>
    %38 = tpu.matmul %36, %37, %cst_18 {dimension_numbers = #tpu.dot_dimension_numbers<[1], [0], [0], [1], [0, 0, 1, 1], [], []>} : vector<16x32xf32>, vector<32x32xf32>, vector<16x32xf32> -> vector<16x32xf32>
    %c0_19 = arith.constant 0 : index
    %c0_20 = arith.constant 0 : index
    %39 = vector.load %arg6[%c0_19, %c0_20] : memref<1x32xf32, #tpu.memory_space<vmem>>, vector<1x32xf32>
    %40 = vector.broadcast %39 : vector<1x32xf32> to vector<16x32xf32>
    %41 = arith.addf %38, %40 : vector<16x32xf32>
    %c0_21 = arith.constant 0 : index
    %c0_22 = arith.constant 0 : index
    %42 = vector.load %arg7[%c0_21, %c0_22] : memref<16x32xf32, #tpu.memory_space<vmem>>, vector<16x32xf32>
    tpu.vector_store %arg7[%c0_21, %c0_22], %41 {strides = array<i32>} : memref<16x32xf32, #tpu.memory_space<vmem>>, vector<16x32xf32>,
    return
  }
}

</mosaic_0001>

<llo_original>
// kernel: mha_attn.1
$region0: #{mha_attn.1}
  #allocation0 [shape = 'u32[]', space=smem, size = 0x4, offset = 0x4, fixed_abs, tag = 'smem constant byte address 0x4 - core index']
  #allocation1 [shape = 'u32[144,128]{1,0:T(1,128)}', space=vmem, size = 0x12000, scoped, tag = 'internal scratch']
  %s0 = inlined_call_operand.vmem [shape: f32[48,32], index: 0, kind: input, shape index: {}]
  %s1 = inlined_call_operand.vmem [shape: f32[1,16,16], index: 1, kind: input, shape index: {}]
  %s2 = inlined_call_operand.vmem [shape: f32[32,96], index: 2, kind: input, shape index: {}]
  %s3 = inlined_call_operand.vmem [shape: f32[1,96], index: 3, kind: input, shape index: {}]
  %s4 = inlined_call_operand.vmem [shape: f32[4,1,32], index: 4, kind: input, shape index: {}]
  %s5 = inlined_call_operand.vmem [shape: f32[32,32], index: 5, kind: input, shape index: {}]
  %s6 = inlined_call_operand.vmem [shape: f32[1,32], index: 6, kind: input, shape index: {}]
  %s7 = inlined_call_operand.hbm [shape: f32[16,32], index: 7, kind: output, shape index: {}]
  %s8 = sld [smem:[#allocation0]]
  $region38: #{mha_attn.1} parent=0
    _
  %s10 = ssub.s32 1, %s8
  %s11 = scalar_select 0, %s10, %s8
  $region1: #{mha_attn.1} parent=0
    #allocation2 [shape = 'u8[8192]{0}', space=vmem, size = 0x2000, scoped, tag = 'output window, operand 0, single buffered']
    #allocation3 [shape = 's32[1]{0}', space=sflag, size = 0x4, scoped, tag = 'scoped memory for mha_attn.1']
    %12 = vsyncpa [#allocation3], 0
    // Predicated region
    $region2: #{mha_attn.1} parent=1 // pred_check
      _
    $region3: #{mha_attn.1} parent=1 // pred_check_branch
      %14 = sbr.rel (0) target = $region5
    $region4: #{mha_attn.1} parent=1 // pred_region
      _
    $region5: #{mha_attn.1} parent=1 // pred_fallthru
      _
    // Predicated region
    $region6: #{mha_attn.1} parent=1 // pred_check
      _
    $region7: #{mha_attn.1} parent=1 // pred_check_branch
      %16 = sbr.rel (0) target = $region9
    $region8: #{mha_attn.1} parent=1 // pred_region
      _
    $region9: #{mha_attn.1} parent=1 // pred_fallthru
      _
    // Predicated region
    $region10: #{mha_attn.1} parent=1 // pred_check
      _
    $region11: #{mha_attn.1} parent=1 // pred_check_branch
      %18 = sbr.rel (0) target = $region13
    $region12: #{mha_attn.1} parent=1 // pred_region
      _
    $region13: #{mha_attn.1} parent=1 // pred_fallthru
      _
    // Predicated region
    $region14: #{mha_attn.1} parent=1 // pred_check
      _
    $region15: #{mha_attn.1} parent=1 // pred_check_branch
      %20 = sbr.rel (0) target = $region17
    $region16: #{mha_attn.1} parent=1 // pred_region
      _
    $region17: #{mha_attn.1} parent=1 // pred_fallthru
      _
    // Predicated region
    $region18: #{mha_attn.1} parent=1 // pred_check
      _
    $region19: #{mha_attn.1} parent=1 // pred_check_branch
      %22 = sbr.rel (0) target = $region21
    $region20: #{mha_attn.1} parent=1 // pred_region
      _
    $region21: #{mha_attn.1} parent=1 // pred_fallthru
      _
    // Predicated region
    $region22: #{mha_attn.1} parent=1 // pred_check
      _
    $region23: #{mha_attn.1} parent=1 // pred_check_branch
      %24 = sbr.rel (0) target = $region25
    $region24: #{mha_attn.1} parent=1 // pred_region
      _
    $region25: #{mha_attn.1} parent=1 // pred_fallthru
      _
    // Predicated region
    $region26: #{mha_attn.1} parent=1 // pred_check
      _
    $region27: #{mha_attn.1} parent=1 // pred_check_branch
      %26 = sbr.rel (0) target = $region29
    $region28: #{mha_attn.1} parent=1 // pred_region
      _
    $region29: #{mha_attn.1} parent=1 // pred_fallthru
      _
    %v27 = vld [vmem:[%s0] sm:$0xff]
    %v28 = vld [vmem:[%s0 + $0x8] sm:$0xff]
    %v29 = vld [vmem:[%s0 + $0x10] sm:$0xff]
    %v30 = vld [vmem:[%s0 + $0x18] sm:$0xff]
    %v31 = vld [vmem:[%s0 + $0x20] sm:$0xff]
    %v32 = vld [vmem:[%s0 + $0x28] sm:$0xff]
    %v33 = vld [vmem:[%s2] sm:$0xff]
    %v34 = vld [vmem:[%s2 + $0x8] sm:$0xff]
    %v35 = vld [vmem:[%s2 + $0x10] sm:$0xff]
    %v36 = vld [vmem:[%s2 + $0x18] sm:$0xff]
    %v37 = vld [vmem:[%s3] sm:$0x1]
    %v39 = vlaneseq
    %v40 = vshrl.u32 %v39, 7
    %v41 = vsub.s32 0, %v40
    %v42 = vrot.slane %v37, %v41
    %vm44 = vcmask 261120
    %v46 = vsel %vm44, %v27, 0
    %v49 = vsel %vm44, %v28, 0
    %v52 = vsel %vm44, %v29, 0
    %v55 = vsel %vm44, %v30, 0
    %v58 = vsel %vm44, %v31, 0
    %v61 = vsel %vm44, %v32, 0
    %63 = vmatprep.subr.mxu0 0.0
    %64 = vmatpush1.msra.mxu0 %v33
    %65 = vmatprep.subr.mxu0 0.0
    %66 = vmatpush1.msra.mxu0 %v34
    %67 = vmatprep.subr.mxu0 0.0
    %68 = vmatpush1.msra.mxu0 %v35
    %69 = vmatprep.subr.mxu0 0.0
    %70 = vmatpush1.msra.mxu0 %v36
    %71 = vmatprep.subr.mxu0 0.0
    %72 = vmatpush1.msra.mxu0 0.0
    %73 = vmatprep.subr.mxu0 0.0
    %74 = vmatpush1.msra.mxu0 0.0
    %75 = vmatprep.subr.mxu0 0.0
    %76 = vmatpush1.msra.mxu0 0.0
    %77 = vmatprep.subr.mxu0 0.0
    %78 = vmatpush1.msra.mxu0 0.0
    %79 = vmatprep.subr.mxu0 0.0
    %80 = vmatpush1.msra.mxu0 0.0
    %81 = vmatprep.subr.mxu0 0.0
    %82 = vmatpush1.msra.mxu0 0.0
    %83 = vmatprep.subr.mxu0 0.0
    %84 = vmatpush1.msra.mxu0 0.0
    %85 = vmatprep.subr.mxu0 0.0
    %86 = vmatpush1.msra.mxu0 0.0
    %87 = vmatprep.subr.mxu0 0.0
    %88 = vmatpush1.msra.mxu0 0.0
    %89 = vmatprep.subr.mxu0 0.0
    %90 = vmatpush1.msra.mxu0 0.0
    %91 = vmatprep.subr.mxu0 0.0
    %92 = vmatpush1.msra.mxu0 0.0
    %93 = vmatprep.subr.mxu0 0.0
    %94 = vmatpush1.msra.mxu0 0.0
    %95 = vmatprep.subr.mxu0 0.0
    %96 = vmatpush1.msra.mxu0 0.0
    %97 = vmatprep.subr.mxu0 0.0
    %98 = vmatpush1.msra.mxu0 0.0
    %99 = vmatprep.subr.mxu0 0.0
    %100 = vmatpush1.msra.mxu0 0.0
    %101 = vmatprep.subr.mxu0 0.0
    %102 = vmatpush1.msra.mxu0 0.0
    %103 = vmatprep.subr.mxu0 0.0
    %104 = vmatpush1.msra.mxu0 0.0
    %105 = vmatprep.subr.mxu0 0.0
    %106 = vmatpush1.msra.mxu0 0.0
    %107 = vmatprep.subr.mxu0 0.0
    %108 = vmatpush1.msra.mxu0 0.0
    %109 = vmatprep.subr.mxu0 0.0
    %110 = vmatpush1.msra.mxu0 0.0
    %111 = vmatprep.subr.mxu0 0.0
    %112 = vmatpush1.msra.mxu0 0.0
    %113 = vmatprep.subr.mxu0 0.0
    %114 = vmatpush1.msra.mxu0 0.0
    %115 = vmatprep.subr.mxu0 0.0
    %116 = vmatpush1.msra.mxu0 0.0
    %117 = vmatprep.subr.mxu0 0.0
    %118 = vmatpush1.msra.mxu0 0.0
    %119 = vmatprep.subr.mxu0 0.0
    %120 = vmatpush1.msra.mxu0 0.0
    %121 = vmatprep.subr.mxu0 0.0
    %122 = vmatpush1.msra.mxu0 0.0
    %123 = vmatprep.subr.mxu0 0.0
    %124 = vmatpush1.msra.mxu0 0.0
    %125 = vmatprep.subr.mxu0 0.0
    %126 = vmatpush1.msra.mxu0 0.0
    %127 = vmatprep.mubr.f32.mxu0 0.0
    %128 = vmatmul.mubr.f32.gmra.mrb[0].mxu0 %v46
    %v129 = vpop.f32.mrb[0].mxu0
    %v130 = vadd.f32 %v42, %v129
    %v131 = vpop.f32.mrb[0].mxu0
    %132 = vmatprep.mubr.f32.mxu0 0.0
    %133 = vmatmul.mubr.f32.gmra.mrb[0].mxu0 %v49
    %v134 = vpop.f32.mrb[0].mxu0
    %v135 = vadd.f32 %v42, %v134
    %v136 = vpop.f32.mrb[0].mxu0
    %137 = vmatprep.mubr.f32.mxu0 0.0
    %138 = vmatmul.mubr.f32.gmra.mrb[0].mxu0 %v52
    %v139 = vpop.f32.mrb[0].mxu0
    %v140 = vadd.f32 %v42, %v139
    %v141 = vpop.f32.mrb[0].mxu0
    %142 = vmatprep.mubr.f32.mxu0 0.0
    %143 = vmatmul.mubr.f32.gmra.mrb[0].mxu0 %v55
    %v144 = vpop.f32.mrb[0].mxu0
    %v145 = vadd.f32 %v42, %v144
    %v146 = vpop.f32.mrb[0].mxu0
    %147 = vmatprep.mubr.f32.mxu0 0.0
    %148 = vmatmul.mubr.f32.gmra.mrb[0].mxu0 %v58
    %v149 = vpop.f32.mrb[0].mxu0
    %v150 = vadd.f32 %v42, %v149
    %v151 = vpop.f32.mrb[0].mxu0
    %152 = vmatprep.mubr.f32.mxu0 0.0
    %153 = vmatmul.mubr.f32.gmra.mrb[0].mxu0 %v61
    %v154 = vpop.f32.mrb[0].mxu0
    %v155 = vadd.f32 %v42, %v154
    %v156 = vpop.f32.mrb[0].mxu0
    %157 = vdwg.mxu0
    %v158 = vld [vmem:[%s4] sm:$0x1]
    %v159 = vld [vmem:[%s4 + $0x1] sm:$0x1]
    %v160 = vld [vmem:[%s4 + $0x2] sm:$0x1]
    %v161 = vld [vmem:[%s4 + $0x3] sm:$0x1]
    %v166 = vlaneseq
    %v167 = vshrl.u32 %v166, 7
    %v168 = vsub.s32 0, %v167
    %v169 = vrot.slane %v158, %v168
    %v170 = vlaneseq
    %v171 = vshrl.u32 %v170, 7
    %v172 = vsub.s32 0, %v171
    %v173 = vrot.slane %v159, %v172
    %v174 = vlaneseq
    %v175 = vshrl.u32 %v174, 7
    %v176 = vsub.s32 0, %v175
    %v177 = vrot.slane %v160, %v176
    %v178 = vlaneseq
    %v179 = vshrl.u32 %v178, 7
    %v180 = vsub.s32 0, %v179
    %v181 = vrot.slane %v161, %v180
    %182 = vrot.lane.b32.xlu0 %v169, 32
    %v183 = vpop.permute.xlu0 %182
    %184 = vrot.lane.b32.xlu0 %v173, 32
    %v185 = vpop.permute.xlu0 %184
    %186 = vrot.lane.b32.xlu0 %v177, 32
    %v187 = vpop.permute.xlu0 %186
    %188 = vrot.lane.b32.xlu0 %v181, 32
    %v189 = vpop.permute.xlu0 %188
    %v194 = vmul.f32 %v140, %v183
    %v195 = vmul.f32 %v145, %v183
    %v196 = vmul.f32 %v140, %v185
    %v197 = vmul.f32 %v145, %v185
    %v198 = vmul.f32 %v140, %v187
    %v199 = vmul.f32 %v145, %v187
    %v200 = vmul.f32 %v140, %v189
    %v201 = vmul.f32 %v145, %v189
    %v202 = vld [vmem:[%s1] sm:$0xff]
    %v203 = vld [vmem:[%s1 + $0x8] sm:$0xff]
    %206 = vrot.lane.b32.xlu0 %v194, 96
    %v207 = vpop.permute.xlu0 %206
    %208 = vrot.lane.b32.xlu0 %v195, 96
    %v209 = vpop.permute.xlu0 %208
    %v211 = vsel %vm44, %v130, 0
    %v214 = vsel %vm44, %v135, 0
    %v216 = vsel %vm44, %v207, 0
    %v218 = vsel %vm44, %v209, 0
    %220 = vmatprep.subr.mxu0 0.0
    %221 = vmatpush1.xpose.msra.mxu0 %v216
    %222 = vmatprep.subr.mxu0 0.0
    %223 = vmatpush1.xpose.msra.mxu0 %v218
    %224 = vmatprep.subr.mxu0 0.0
    %225 = vmatpush1.xpose.msra.mxu0 0.0
    %226 = vmatprep.subr.mxu0 0.0
    %227 = vmatpush1.xpose.msra.mxu0 0.0
    %228 = vmatprep.subr.mxu0 0.0
    %229 = vmatpush1.xpose.msra.mxu0 0.0
    %230 = vmatprep.subr.mxu0 0.0
    %231 = vmatpush1.xpose.msra.mxu0 0.0
    %232 = vmatprep.subr.mxu0 0.0
    %233 = vmatpush1.xpose.msra.mxu0 0.0
    %234 = vmatprep.subr.mxu0 0.0
    %235 = vmatpush1.xpose.msra.mxu0 0.0
    %236 = vmatprep.subr.mxu0 0.0
    %237 = vmatpush1.xpose.msra.mxu0 0.0
    %238 = vmatprep.subr.mxu0 0.0
    %239 = vmatpush1.xpose.msra.mxu0 0.0
    %240 = vmatprep.subr.mxu0 0.0
    %241 = vmatpush1.xpose.msra.mxu0 0.0
    %242 = vmatprep.subr.mxu0 0.0
    %243 = vmatpush1.xpose.msra.mxu0 0.0
    %244 = vmatprep.subr.mxu0 0.0
    %245 = vmatpush1.xpose.msra.mxu0 0.0
    %246 = vmatprep.subr.mxu0 0.0
    %247 = vmatpush1.xpose.msra.mxu0 0.0
    %248 = vmatprep.subr.mxu0 0.0
    %249 = vmatpush1.xpose.msra.mxu0 0.0
    %250 = vmatprep.subr.mxu0 0.0
    %251 = vmatpush1.xpose.msra.mxu0 0.0
    %252 = vmatprep.subr.mxu0 0.0
    %253 = vmatpush1.xpose.msra.mxu0 0.0
    %254 = vmatprep.subr.mxu0 0.0
    %255 = vmatpush1.xpose.msra.mxu0 0.0
    %256 = vmatprep.subr.mxu0 0.0
    %257 = vmatpush1.xpose.msra.mxu0 0.0
    %258 = vmatprep.subr.mxu0 0.0
    %259 = vmatpush1.xpose.msra.mxu0 0.0
    %260 = vmatprep.subr.mxu0 0.0
    %261 = vmatpush1.xpose.msra.mxu0 0.0
    %262 = vmatprep.subr.mxu0 0.0
    %263 = vmatpush1.xpose.msra.mxu0 0.0
    %264 = vmatprep.subr.mxu0 0.0
    %265 = vmatpush1.xpose.msra.mxu0 0.0
    %266 = vmatprep.subr.mxu0 0.0
    %267 = vmatpush1.xpose.msra.mxu0 0.0
    %268 = vmatprep.subr.mxu0 0.0
    %269 = vmatpush1.xpose.msra.mxu0 0.0
    %270 = vmatprep.subr.mxu0 0.0
    %271 = vmatpush1.xpose.msra.mxu0 0.0
    %272 = vmatprep.subr.mxu0 0.0
    %273 = vmatpush1.xpose.msra.mxu0 0.0
    %274 = vmatprep.subr.mxu0 0.0
    %275 = vmatpush1.xpose.msra.mxu0 0.0
    %276 = vmatprep.subr.mxu0 0.0
    %277 = vmatpush1.xpose.msra.mxu0 0.0
    %278 = vmatprep.subr.mxu0 0.0
    %279 = vmatpush1.xpose.msra.mxu0 0.0
    %280 = vmatprep.subr.mxu0 0.0
    %281 = vmatpush1.xpose.msra.mxu0 0.0
    %282 = vmatprep.subr.mxu0 0.0
    %283 = vmatpush1.xpose.msra.mxu0 0.0
    %284 = vmatprep.mubr.f32.mxu0 0.0
    %285 = vmatmul.mubr.f32.gmra.mrb[0].mxu0 %v211
    %v286 = vpop.f32.mrb[0].mxu0
    %v287 = vadd.f32 %v202, %v286
    %v288 = vpop.f32.mrb[0].mxu0
    %289 = vmatprep.mubr.f32.mxu0 0.0
    %290 = vmatmul.mubr.f32.gmra.mrb[0].mxu0 %v214
    %v291 = vpop.f32.mrb[0].mxu0
    %v292 = vadd.f32 %v203, %v291
    %v293 = vpop.f32.mrb[0].mxu0
    %294 = vdwg.mxu0
    %297 = vrot.lane.b32.xlu0 %v196, 96
    %v298 = vpop.permute.xlu0 %297
    %299 = vrot.lane.b32.xlu0 %v197, 96
    %v300 = vpop.permute.xlu0 %299
    %v301 = vsel %vm44, %v298, 0
    %v303 = vsel %vm44, %v300, 0
    %305 = vmatprep.subr.mxu0 0.0
    %306 = vmatpush1.xpose.msra.mxu0 %v301
    %307 = vmatprep.subr.mxu0 0.0
    %308 = vmatpush1.xpose.msra.mxu0 %v303
    %309 = vmatprep.subr.mxu0 0.0
    %310 = vmatpush1.xpose.msra.mxu0 0.0
    %311 = vmatprep.subr.mxu0 0.0
    %312 = vmatpush1.xpose.msra.mxu0 0.0
    %313 = vmatprep.subr.mxu0 0.0
    %314 = vmatpush1.xpose.msra.mxu0 0.0
    %315 = vmatprep.subr.mxu0 0.0
    %316 = vmatpush1.xpose.msra.mxu0 0.0
    %317 = vmatprep.subr.mxu0 0.0
    %318 = vmatpush1.xpose.msra.mxu0 0.0
    %319 = vmatprep.subr.mxu0 0.0
    %320 = vmatpush1.xpose.msra.mxu0 0.0
    %321 = vmatprep.subr.mxu0 0.0
    %322 = vmatpush1.xpose.msra.mxu0 0.0
    %323 = vmatprep.subr.mxu0 0.0
    %324 = vmatpush1.xpose.msra.mxu0 0.0
    %325 = vmatprep.subr.mxu0 0.0
    %326 = vmatpush1.xpose.msra.mxu0 0.0
    %327 = vmatprep.subr.mxu0 0.0
    %328 = vmatpush1.xpose.msra.mxu0 0.0
    %329 = vmatprep.subr.mxu0 0.0
    %330 = vmatpush1.xpose.msra.mxu0 0.0
    %331 = vmatprep.subr.mxu0 0.0
    %332 = vmatpush1.xpose.msra.mxu0 0.0
    %333 = vmatprep.subr.mxu0 0.0
    %334 = vmatpush1.xpose.msra.mxu0 0.0
    %335 = vmatprep.subr.mxu0 0.0
    %336 = vmatpush1.xpose.msra.mxu0 0.0
    %337 = vmatprep.subr.mxu0 0.0
    %338 = vmatpush1.xpose.msra.mxu0 0.0
    %339 = vmatprep.subr.mxu0 0.0
    %340 = vmatpush1.xpose.msra.mxu0 0.0
    %341 = vmatprep.subr.mxu0 0.0
    %342 = vmatpush1.xpose.msra.mxu0 0.0
    %343 = vmatprep.subr.mxu0 0.0
    %344 = vmatpush1.xpose.msra.mxu0 0.0
    %345 = vmatprep.subr.mxu0 0.0
    %346 = vmatpush1.xpose.msra.mxu0 0.0
    %347 = vmatprep.subr.mxu0 0.0
    %348 = vmatpush1.xpose.msra.mxu0 0.0
    %349 = vmatprep.subr.mxu0 0.0
    %350 = vmatpush1.xpose.msra.mxu0 0.0
    %351 = vmatprep.subr.mxu0 0.0
    %352 = vmatpush1.xpose.msra.mxu0 0.0
    %353 = vmatprep.subr.mxu0 0.0
    %354 = vmatpush1.xpose.msra.mxu0 0.0
    %355 = vmatprep.subr.mxu0 0.0
    %356 = vmatpush1.xpose.msra.mxu0 0.0
    %357 = vmatprep.subr.mxu0 0.0
    %358 = vmatpush1.xpose.msra.mxu0 0.0
    %359 = vmatprep.subr.mxu0 0.0
    %360 = vmatpush1.xpose.msra.mxu0 0.0
    %361 = vmatprep.subr.mxu0 0.0
    %362 = vmatpush1.xpose.msra.mxu0 0.0
    %363 = vmatprep.subr.mxu0 0.0
    %364 = vmatpush1.xpose.msra.mxu0 0.0
    %365 = vmatprep.subr.mxu0 0.0
    %366 = vmatpush1.xpose.msra.mxu0 0.0
    %367 = vmatprep.subr.mxu0 0.0
    %368 = vmatpush1.xpose.msra.mxu0 0.0
    %369 = vmatprep.mubr.f32.mxu0 0.0
    %370 = vmatmul.mubr.f32.gmra.mrb[0].mxu0 %v211
    %v371 = vpop.f32.mrb[0].mxu0
    %v372 = vadd.f32 %v202, %v371
    %v373 = vpop.f32.mrb[0].mxu0
    %374 = vmatprep.mubr.f32.mxu0 0.0
    %375 = vmatmul.mubr.f32.gmra.mrb[0].mxu0 %v214
    %v376 = vpop.f32.mrb[0].mxu0
    %v377 = vadd.f32 %v203, %v376
    %v378 = vpop.f32.mrb[0].mxu0
    %379 = vdwg.mxu0
    %382 = vrot.lane.b32.xlu0 %v198, 96
    %v383 = vpop.permute.xlu0 %382
    %384 = vrot.lane.b32.xlu0 %v199, 96
    %v385 = vpop.permute.xlu0 %384
    %v386 = vsel %vm44, %v383, 0
    %v388 = vsel %vm44, %v385, 0
    %390 = vmatprep.subr.mxu0 0.0
    %391 = vmatpush1.xpose.msra.mxu0 %v386
    %392 = vmatprep.subr.mxu0 0.0
    %393 = vmatpush1.xpose.msra.mxu0 %v388
    %394 = vmatprep.subr.mxu0 0.0
    %395 = vmatpush1.xpose.msra.mxu0 0.0
    %396 = vmatprep.subr.mxu0 0.0
    %397 = vmatpush1.xpose.msra.mxu0 0.0
    %398 = vmatprep.subr.mxu0 0.0
    %399 = vmatpush1.xpose.msra.mxu0 0.0
    %400 = vmatprep.subr.mxu0 0.0
    %401 = vmatpush1.xpose.msra.mxu0 0.0
    %402 = vmatprep.subr.mxu0 0.0
    %403 = vmatpush1.xpose.msra.mxu0 0.0
    %404 = vmatprep.subr.mxu0 0.0
    %405 = vmatpush1.xpose.msra.mxu0 0.0
    %406 = vmatprep.subr.mxu0 0.0
    %407 = vmatpush1.xpose.msra.mxu0 0.0
    %408 = vmatprep.subr.mxu0 0.0
    %409 = vmatpush1.xpose.msra.mxu0 0.0
    %410 = vmatprep.subr.mxu0 0.0
    %411 = vmatpush1.xpose.msra.mxu0 0.0
    %412 = vmatprep.subr.mxu0 0.0
    %413 = vmatpush1.xpose.msra.mxu0 0.0
    %414 = vmatprep.subr.mxu0 0.0
    %415 = vmatpush1.xpose.msra.mxu0 0.0
    %416 = vmatprep.subr.mxu0 0.0
    %417 = vmatpush1.xpose.msra.mxu0 0.0
    %418 = vmatprep.subr.mxu0 0.0
    %419 = vmatpush1.xpose.msra.mxu0 0.0
    %420 = vmatprep.subr.mxu0 0.0
    %421 = vmatpush1.xpose.msra.mxu0 0.0
    %422 = vmatprep.subr.mxu0 0.0
    %423 = vmatpush1.xpose.msra.mxu0 0.0
    %424 = vmatprep.subr.mxu0 0.0
    %425 = vmatpush1.xpose.msra.mxu0 0.0
    %426 = vmatprep.subr.mxu0 0.0
    %427 = vmatpush1.xpose.msra.mxu0 0.0
    %428 = vmatprep.subr.mxu0 0.0
    %429 = vmatpush1.xpose.msra.mxu0 0.0
    %430 = vmatprep.subr.mxu0 0.0
    %431 = vmatpush1.xpose.msra.mxu0 0.0
    %432 = vmatprep.subr.mxu0 0.0
    %433 = vmatpush1.xpose.msra.mxu0 0.0
    %434 = vmatprep.subr.mxu0 0.0
    %435 = vmatpush1.xpose.msra.mxu0 0.0
    %436 = vmatprep.subr.mxu0 0.0
    %437 = vmatpush1.xpose.msra.mxu0 0.0
    %438 = vmatprep.subr.mxu0 0.0
    %439 = vmatpush1.xpose.msra.mxu0 0.0
    %440 = vmatprep.subr.mxu0 0.0
    %441 = vmatpush1.xpose.msra.mxu0 0.0
    %442 = vmatprep.subr.mxu0 0.0
    %443 = vmatpush1.xpose.msra.mxu0 0.0
    %444 = vmatprep.subr.mxu0 0.0
    %445 = vmatpush1.xpose.msra.mxu0 0.0
    %446 = vmatprep.subr.mxu0 0.0
    %447 = vmatpush1.xpose.msra.mxu0 0.0
    %448 = vmatprep.subr.mxu0 0.0
    %449 = vmatpush1.xpose.msra.mxu0 0.0
    %450 = vmatprep.subr.mxu0 0.0
    %451 = vmatpush1.xpose.msra.mxu0 0.0
    %452 = vmatprep.subr.mxu0 0.0
    %453 = vmatpush1.xpose.msra.mxu0 0.0
    %454 = vmatprep.mubr.f32.mxu0 0.0
    %455 = vmatmul.mubr.f32.gmra.mrb[0].mxu0 %v211
    %v456 = vpop.f32.mrb[0].mxu0
    %v457 = vadd.f32 %v202, %v456
    %v458 = vpop.f32.mrb[0].mxu0
    %459 = vmatprep.mubr.f32.mxu0 0.0
    %460 = vmatmul.mubr.f32.gmra.mrb[0].mxu0 %v214
    %v461 = vpop.f32.mrb[0].mxu0
    %v462 = vadd.f32 %v203, %v461
    %v463 = vpop.f32.mrb[0].mxu0
    %464 = vdwg.mxu0
    %467 = vrot.lane.b32.xlu0 %v200, 96
    %v468 = vpop.permute.xlu0 %467
    %469 = vrot.lane.b32.xlu0 %v201, 96
    %v470 = vpop.permute.xlu0 %469
    %v471 = vsel %vm44, %v468, 0
    %v473 = vsel %vm44, %v470, 0
    %475 = vmatprep.subr.mxu0 0.0
    %476 = vmatpush1.xpose.msra.mxu0 %v471
    %477 = vmatprep.subr.mxu0 0.0
    %478 = vmatpush1.xpose.msra.mxu0 %v473
    %479 = vmatprep.subr.mxu0 0.0
    %480 = vmatpush1.xpose.msra.mxu0 0.0
    %481 = vmatprep.subr.mxu0 0.0
    %482 = vmatpush1.xpose.msra.mxu0 0.0
    %483 = vmatprep.subr.mxu0 0.0
    %484 = vmatpush1.xpose.msra.mxu0 0.0
    %485 = vmatprep.subr.mxu0 0.0
    %486 = vmatpush1.xpose.msra.mxu0 0.0
    %487 = vmatprep.subr.mxu0 0.0
    %488 = vmatpush1.xpose.msra.mxu0 0.0
    %489 = vmatprep.subr.mxu0 0.0
    %490 = vmatpush1.xpose.msra.mxu0 0.0
    %491 = vmatprep.subr.mxu0 0.0
    %492 = vmatpush1.xpose.msra.mxu0 0.0
    %493 = vmatprep.subr.mxu0 0.0
    %494 = vmatpush1.xpose.msra.mxu0 0.0
    %495 = vmatprep.subr.mxu0 0.0
    %496 = vmatpush1.xpose.msra.mxu0 0.0
    %497 = vmatprep.subr.mxu0 0.0
    %498 = vmatpush1.xpose.msra.mxu0 0.0
    %499 = vmatprep.subr.mxu0 0.0
    %500 = vmatpush1.xpose.msra.mxu0 0.0
    %501 = vmatprep.subr.mxu0 0.0
    %502 = vmatpush1.xpose.msra.mxu0 0.0
    %503 = vmatprep.subr.mxu0 0.0
    %504 = vmatpush1.xpose.msra.mxu0 0.0
    %505 = vmatprep.subr.mxu0 0.0
    %506 = vmatpush1.xpose.msra.mxu0 0.0
    %507 = vmatprep.subr.mxu0 0.0
    %508 = vmatpush1.xpose.msra.mxu0 0.0
    %509 = vmatprep.subr.mxu0 0.0
    %510 = vmatpush1.xpose.msra.mxu0 0.0
    %511 = vmatprep.subr.mxu0 0.0
    %512 = vmatpush1.xpose.msra.mxu0 0.0
    %513 = vmatprep.subr.mxu0 0.0
    %514 = vmatpush1.xpose.msra.mxu0 0.0
    %515 = vmatprep.subr.mxu0 0.0
    %516 = vmatpush1.xpose.msra.mxu0 0.0
    %517 = vmatprep.subr.mxu0 0.0
    %518 = vmatpush1.xpose.msra.mxu0 0.0
    %519 = vmatprep.subr.mxu0 0.0
    %520 = vmatpush1.xpose.msra.mxu0 0.0
    %521 = vmatprep.subr.mxu0 0.0
    %522 = vmatpush1.xpose.msra.mxu0 0.0
    %523 = vmatprep.subr.mxu0 0.0
    %524 = vmatpush1.xpose.msra.mxu0 0.0
    %525 = vmatprep.subr.mxu0 0.0
    %526 = vmatpush1.xpose.msra.mxu0 0.0
    %527 = vmatprep.subr.mxu0 0.0
    %528 = vmatpush1.xpose.msra.mxu0 0.0
    %529 = vmatprep.subr.mxu0 0.0
    %530 = vmatpush1.xpose.msra.mxu0 0.0
    %531 = vmatprep.subr.mxu0 0.0
    %532 = vmatpush1.xpose.msra.mxu0 0.0
    %533 = vmatprep.subr.mxu0 0.0
    %534 = vmatpush1.xpose.msra.mxu0 0.0
    %535 = vmatprep.subr.mxu0 0.0
    %536 = vmatpush1.xpose.msra.mxu0 0.0
    %537 = vmatprep.subr.mxu0 0.0
    %538 = vmatpush1.xpose.msra.mxu0 0.0
    %539 = vmatprep.mubr.f32.mxu0 0.0
    %540 = vmatmul.mubr.f32.gmra.mrb[0].mxu0 %v211
    %v541 = vpop.f32.mrb[0].mxu0
    %v542 = vadd.f32 %v202, %v541
    %v543 = vpop.f32.mrb[0].mxu0
    %544 = vmatprep.mubr.f32.mxu0 0.0
    %545 = vmatmul.mubr.f32.gmra.mrb[0].mxu0 %v214
    %v546 = vpop.f32.mrb[0].mxu0
    %v547 = vadd.f32 %v203, %v546
    %v548 = vpop.f32.mrb[0].mxu0
    %549 = vdwg.mxu0
    %vm550 = vcmask 130048
    %v551 = vsel %vm550, %v287, -inf
    %552 = vmax.xlane.f32.xlu0 %v551
    %v553 = vpop.xlane.xlu0 %552
    %v554 = vsel %vm550, %v292, -inf
    %555 = vmax.xlane.f32.xlu0 %v554
    %v556 = vpop.xlane.xlu0 %555
    %v557 = vsel %vm550, %v372, -inf
    %558 = vmax.xlane.f32.xlu0 %v557
    %v559 = vpop.xlane.xlu0 %558
    %v560 = vsel %vm550, %v377, -inf
    %561 = vmax.xlane.f32.xlu0 %v560
    %v562 = vpop.xlane.xlu0 %561
    %v563 = vsel %vm550, %v457, -inf
    %564 = vmax.xlane.f32.xlu0 %v563
    %v565 = vpop.xlane.xlu0 %564
    %v566 = vsel %vm550, %v462, -inf
    %567 = vmax.xlane.f32.xlu0 %v566
    %v568 = vpop.xlane.xlu0 %567
    %v569 = vsel %vm550, %v542, -inf
    %570 = vmax.xlane.f32.xlu0 %v569
    %v571 = vpop.xlane.xlu0 %570
    %v572 = vsel %vm550, %v547, -inf
    %573 = vmax.xlane.f32.xlu0 %v572
    %v574 = vpop.xlane.xlu0 %573
    %v575 = vsub.f32 %v287, %v553
    %v576 = vsub.f32 %v292, %v556
    %v577 = vsub.f32 %v372, %v559
    %v578 = vsub.f32 %v377, %v562
    %v579 = vsub.f32 %v457, %v565
    %v580 = vsub.f32 %v462, %v568
    %v581 = vsub.f32 %v542, %v571
    %v582 = vsub.f32 %v547, %v574
    %v583 = vmul.f32 %v575, 1.442695
    %v584 = vpow.pop %v583
    %v585 = vmul.f32 %v576, 1.442695
    %v586 = vpow.pop %v585
    %v587 = vmul.f32 %v577, 1.442695
    %v588 = vpow.pop %v587
    %v589 = vmul.f32 %v578, 1.442695
    %v590 = vpow.pop %v589
    %v591 = vmul.f32 %v579, 1.442695
    %v592 = vpow.pop %v591
    %v593 = vmul.f32 %v580, 1.442695
    %v594 = vpow.pop %v593
    %v595 = vmul.f32 %v581, 1.442695
    %v596 = vpow.pop %v595
    %v597 = vmul.f32 %v582, 1.442695
    %v598 = vpow.pop %v597
    %v599 = vsel %vm550, %v584, 0.0
    %600 = vadd.xlane.f32.xlu0 %v599
    %v601 = vpop.xlane.xlu0 %600
    %v602 = vsel %vm550, %v586, 0.0
    %603 = vadd.xlane.f32.xlu0 %v602
    %v604 = vpop.xlane.xlu0 %603
    %v605 = vsel %vm550, %v588, 0.0
    %606 = vadd.xlane.f32.xlu0 %v605
    %v607 = vpop.xlane.xlu0 %606
    %v608 = vsel %vm550, %v590, 0.0
    %609 = vadd.xlane.f32.xlu0 %v608
    %v610 = vpop.xlane.xlu0 %609
    %v611 = vsel %vm550, %v592, 0.0
    %612 = vadd.xlane.f32.xlu0 %v611
    %v613 = vpop.xlane.xlu0 %612
    %v614 = vsel %vm550, %v594, 0.0
    %615 = vadd.xlane.f32.xlu0 %v614
    %v616 = vpop.xlane.xlu0 %615
    %v617 = vsel %vm550, %v596, 0.0
    %618 = vadd.xlane.f32.xlu0 %v617
    %v619 = vpop.xlane.xlu0 %618
    %v620 = vsel %vm550, %v598, 0.0
    %621 = vadd.xlane.f32.xlu0 %v620
    %v622 = vpop.xlane.xlu0 %621
    %v623 = vrcp.pop %v601
    %v624 = vrcp.pop %v604
    %v625 = vrcp.pop %v607
    %v626 = vrcp.pop %v610
    %v627 = vrcp.pop %v613
    %v628 = vrcp.pop %v616
    %v629 = vrcp.pop %v619
    %v630 = vrcp.pop %v622
    %v631 = vmul.f32 %v584, %v623
    %v632 = vmul.f32 %v586, %v624
    %v633 = vmul.f32 %v588, %v625
    %v634 = vmul.f32 %v590, %v626
    %v635 = vmul.f32 %v592, %v627
    %v636 = vmul.f32 %v594, %v628
    %v637 = vmul.f32 %v596, %v629
    %v638 = vmul.f32 %v598, %v630
    %639 = vrot.lane.b32.xlu0 %v169, 64
    %v640 = vpop.permute.xlu0 %639
    %641 = vrot.lane.b32.xlu0 %v173, 64
    %v642 = vpop.permute.xlu0 %641
    %643 = vrot.lane.b32.xlu0 %v177, 64
    %v644 = vpop.permute.xlu0 %643
    %645 = vrot.lane.b32.xlu0 %v181, 64
    %v646 = vpop.permute.xlu0 %645
    %v651 = vmul.f32 %v150, %v640
    %v652 = vmul.f32 %v155, %v640
    %v653 = vmul.f32 %v150, %v642
    %v654 = vmul.f32 %v155, %v642
    %v655 = vmul.f32 %v150, %v644
    %v656 = vmul.f32 %v155, %v644
    %v657 = vmul.f32 %v150, %v646
    %v658 = vmul.f32 %v155, %v646
    %661 = vrot.lane.b32.xlu0 %v651, 64
    %v662 = vpop.permute.xlu0 %661
    %663 = vrot.lane.b32.xlu0 %v652, 64
    %v664 = vpop.permute.xlu0 %663
    %v668 = vsel %vm550, %v631, 0
    %v671 = vsel %vm550, %v632, 0
    %673 = vmatprep.subr.mxu0 0.0
    %674 = vmatpush1.msra.mxu0 %v662
    %675 = vmatprep.subr.mxu0 0.0
    %676 = vmatpush1.msra.mxu0 %v664
    %677 = vmatprep.subr.mxu0 0.0
    %678 = vmatpush1.msra.mxu0 0.0
    %679 = vmatprep.subr.mxu0 0.0
    %680 = vmatpush1.msra.mxu0 0.0
    %681 = vmatprep.subr.mxu0 0.0
    %682 = vmatpush1.msra.mxu0 0.0
    %683 = vmatprep.subr.mxu0 0.0
    %684 = vmatpush1.msra.mxu0 0.0
    %685 = vmatprep.subr.mxu0 0.0
    %686 = vmatpush1.msra.mxu0 0.0
    %687 = vmatprep.subr.mxu0 0.0
    %688 = vmatpush1.msra.mxu0 0.0
    %689 = vmatprep.subr.mxu0 0.0
    %690 = vmatpush1.msra.mxu0 0.0
    %691 = vmatprep.subr.mxu0 0.0
    %692 = vmatpush1.msra.mxu0 0.0
    %693 = vmatprep.subr.mxu0 0.0
    %694 = vmatpush1.msra.mxu0 0.0
    %695 = vmatprep.subr.mxu0 0.0
    %696 = vmatpush1.msra.mxu0 0.0
    %697 = vmatprep.subr.mxu0 0.0
    %698 = vmatpush1.msra.mxu0 0.0
    %699 = vmatprep.subr.mxu0 0.0
    %700 = vmatpush1.msra.mxu0 0.0
    %701 = vmatprep.subr.mxu0 0.0
    %702 = vmatpush1.msra.mxu0 0.0
    %703 = vmatprep.subr.mxu0 0.0
    %704 = vmatpush1.msra.mxu0 0.0
    %705 = vmatprep.subr.mxu0 0.0
    %706 = vmatpush1.msra.mxu0 0.0
    %707 = vmatprep.subr.mxu0 0.0
    %708 = vmatpush1.msra.mxu0 0.0
    %709 = vmatprep.subr.mxu0 0.0
    %710 = vmatpush1.msra.mxu0 0.0
    %711 = vmatprep.subr.mxu0 0.0
    %712 = vmatpush1.msra.mxu0 0.0
    %713 = vmatprep.subr.mxu0 0.0
    %714 = vmatpush1.msra.mxu0 0.0
    %715 = vmatprep.subr.mxu0 0.0
    %716 = vmatpush1.msra.mxu0 0.0
    %717 = vmatprep.subr.mxu0 0.0
    %718 = vmatpush1.msra.mxu0 0.0
    %719 = vmatprep.subr.mxu0 0.0
    %720 = vmatpush1.msra.mxu0 0.0
    %721 = vmatprep.subr.mxu0 0.0
    %722 = vmatpush1.msra.mxu0 0.0
    %723 = vmatprep.subr.mxu0 0.0
    %724 = vmatpush1.msra.mxu0 0.0
    %725 = vmatprep.subr.mxu0 0.0
    %726 = vmatpush1.msra.mxu0 0.0
    %727 = vmatprep.subr.mxu0 0.0
    %728 = vmatpush1.msra.mxu0 0.0
    %729 = vmatprep.subr.mxu0 0.0
    %730 = vmatpush1.msra.mxu0 0.0
    %731 = vmatprep.subr.mxu0 0.0
    %732 = vmatpush1.msra.mxu0 0.0
    %733 = vmatprep.subr.mxu0 0.0
    %734 = vmatpush1.msra.mxu0 0.0
    %735 = vmatprep.subr.mxu0 0.0
    %736 = vmatpush1.msra.mxu0 0.0
    %737 = vmatprep.mubr.f32.mxu0 0.0
    %738 = vmatmul.mubr.f32.gmra.mrb[0].mxu0 %v668
    %v739 = vpop.f32.mrb[0].mxu0
    %v740 = vadd.f32 0.0, %v739
    %v741 = vpop.f32.mrb[0].mxu0
    %742 = vmatprep.mubr.f32.mxu0 0.0
    %743 = vmatmul.mubr.f32.gmra.mrb[0].mxu0 %v671
    %v744 = vpop.f32.mrb[0].mxu0
    %v745 = vadd.f32 0.0, %v744
    %v746 = vpop.f32.mrb[0].mxu0
    %747 = vdwg.mxu0
    %750 = vrot.lane.b32.xlu0 %v653, 64
    %v751 = vpop.permute.xlu0 %750
    %752 = vrot.lane.b32.xlu0 %v654, 64
    %v753 = vpop.permute.xlu0 %752
    %v757 = vsel %vm550, %v633, 0
    %v760 = vsel %vm550, %v634, 0
    %762 = vmatprep.subr.mxu0 0.0
    %763 = vmatpush1.msra.mxu0 %v751
    %764 = vmatprep.subr.mxu0 0.0
    %765 = vmatpush1.msra.mxu0 %v753
    %766 = vmatprep.subr.mxu0 0.0
    %767 = vmatpush1.msra.mxu0 0.0
    %768 = vmatprep.subr.mxu0 0.0
    %769 = vmatpush1.msra.mxu0 0.0
    %770 = vmatprep.subr.mxu0 0.0
    %771 = vmatpush1.msra.mxu0 0.0
    %772 = vmatprep.subr.mxu0 0.0
    %773 = vmatpush1.msra.mxu0 0.0
    %774 = vmatprep.subr.mxu0 0.0
    %775 = vmatpush1.msra.mxu0 0.0
    %776 = vmatprep.subr.mxu0 0.0
    %777 = vmatpush1.msra.mxu0 0.0
    %778 = vmatprep.subr.mxu0 0.0
    %779 = vmatpush1.msra.mxu0 0.0
    %780 = vmatprep.subr.mxu0 0.0
    %781 = vmatpush1.msra.mxu0 0.0
    %782 = vmatprep.subr.mxu0 0.0
    %783 = vmatpush1.msra.mxu0 0.0
    %784 = vmatprep.subr.mxu0 0.0
    %785 = vmatpush1.msra.mxu0 0.0
    %786 = vmatprep.subr.mxu0 0.0
    %787 = vmatpush1.msra.mxu0 0.0
    %788 = vmatprep.subr.mxu0 0.0
    %789 = vmatpush1.msra.mxu0 0.0
    %790 = vmatprep.subr.mxu0 0.0
    %791 = vmatpush1.msra.mxu0 0.0
    %792 = vmatprep.subr.mxu0 0.0
    %793 = vmatpush1.msra.mxu0 0.0
    %794 = vmatprep.subr.mxu0 0.0
    %795 = vmatpush1.msra.mxu0 0.0
    %796 = vmatprep.subr.mxu0 0.0
    %797 = vmatpush1.msra.mxu0 0.0
    %798 = vmatprep.subr.mxu0 0.0
    %799 = vmatpush1.msra.mxu0 0.0
    %800 = vmatprep.subr.mxu0 0.0
    %801 = vmatpush1.msra.mxu0 0.0
    %802 = vmatprep.subr.mxu0 0.0
    %803 = vmatpush1.msra.mxu0 0.0
    %804 = vmatprep.subr.mxu0 0.0
    %805 = vmatpush1.msra.mxu0 0.0
    %806 = vmatprep.subr.mxu0 0.0
    %807 = vmatpush1.msra.mxu0 0.0
    %808 = vmatprep.subr.mxu0 0.0
    %809 = vmatpush1.msra.mxu0 0.0
    %810 = vmatprep.subr.mxu0 0.0
    %811 = vmatpush1.msra.mxu0 0.0
    %812 = vmatprep.subr.mxu0 0.0
    %813 = vmatpush1.msra.mxu0 0.0
    %814 = vmatprep.subr.mxu0 0.0
    %815 = vmatpush1.msra.mxu0 0.0
    %816 = vmatprep.subr.mxu0 0.0
    %817 = vmatpush1.msra.mxu0 0.0
    %818 = vmatprep.subr.mxu0 0.0
    %819 = vmatpush1.msra.mxu0 0.0
    %820 = vmatprep.subr.mxu0 0.0
    %821 = vmatpush1.msra.mxu0 0.0
    %822 = vmatprep.subr.mxu0 0.0
    %823 = vmatpush1.msra.mxu0 0.0
    %824 = vmatprep.subr.mxu0 0.0
    %825 = vmatpush1.msra.mxu0 0.0
    %826 = vmatprep.mubr.f32.mxu0 0.0
    %827 = vmatmul.mubr.f32.gmra.mrb[0].mxu0 %v757
    %v828 = vpop.f32.mrb[0].mxu0
    %v829 = vadd.f32 0.0, %v828
    %v830 = vpop.f32.mrb[0].mxu0
    %831 = vmatprep.mubr.f32.mxu0 0.0
    %832 = vmatmul.mubr.f32.gmra.mrb[0].mxu0 %v760
    %v833 = vpop.f32.mrb[0].mxu0
    %v834 = vadd.f32 0.0, %v833
    %v835 = vpop.f32.mrb[0].mxu0
    %836 = vdwg.mxu0
    %839 = vrot.lane.b32.xlu0 %v655, 64
    %v840 = vpop.permute.xlu0 %839
    %841 = vrot.lane.b32.xlu0 %v656, 64
    %v842 = vpop.permute.xlu0 %841
    %v846 = vsel %vm550, %v635, 0
    %v849 = vsel %vm550, %v636, 0
    %851 = vmatprep.subr.mxu0 0.0
    %852 = vmatpush1.msra.mxu0 %v840
    %853 = vmatprep.subr.mxu0 0.0
    %854 = vmatpush1.msra.mxu0 %v842
    %855 = vmatprep.subr.mxu0 0.0
    %856 = vmatpush1.msra.mxu0 0.0
    %857 = vmatprep.subr.mxu0 0.0
    %858 = vmatpush1.msra.mxu0 0.0
    %859 = vmatprep.subr.mxu0 0.0
    %860 = vmatpush1.msra.mxu0 0.0
    %861 = vmatprep.subr.mxu0 0.0
    %862 = vmatpush1.msra.mxu0 0.0
    %863 = vmatprep.subr.mxu0 0.0
    %864 = vmatpush1.msra.mxu0 0.0
    %865 = vmatprep.subr.mxu0 0.0
    %866 = vmatpush1.msra.mxu0 0.0
    %867 = vmatprep.subr.mxu0 0.0
    %868 = vmatpush1.msra.mxu0 0.0
    %869 = vmatprep.subr.mxu0 0.0
    %870 = vmatpush1.msra.mxu0 0.0
    %871 = vmatprep.subr.mxu0 0.0
    %872 = vmatpush1.msra.mxu0 0.0
    %873 = vmatprep.subr.mxu0 0.0
    %874 = vmatpush1.msra.mxu0 0.0
    %875 = vmatprep.subr.mxu0 0.0
    %876 = vmatpush1.msra.mxu0 0.0
    %877 = vmatprep.subr.mxu0 0.0
    %878 = vmatpush1.msra.mxu0 0.0
    %879 = vmatprep.subr.mxu0 0.0
    %880 = vmatpush1.msra.mxu0 0.0
    %881 = vmatprep.subr.mxu0 0.0
    %882 = vmatpush1.msra.mxu0 0.0
    %883 = vmatprep.subr.mxu0 0.0
    %884 = vmatpush1.msra.mxu0 0.0
    %885 = vmatprep.subr.mxu0 0.0
    %886 = vmatpush1.msra.mxu0 0.0
    %887 = vmatprep.subr.mxu0 0.0
    %888 = vmatpush1.msra.mxu0 0.0
    %889 = vmatprep.subr.mxu0 0.0
    %890 = vmatpush1.msra.mxu0 0.0
    %891 = vmatprep.subr.mxu0 0.0
    %892 = vmatpush1.msra.mxu0 0.0
    %893 = vmatprep.subr.mxu0 0.0
    %894 = vmatpush1.msra.mxu0 0.0
    %895 = vmatprep.subr.mxu0 0.0
    %896 = vmatpush1.msra.mxu0 0.0
    %897 = vmatprep.subr.mxu0 0.0
    %898 = vmatpush1.msra.mxu0 0.0
    %899 = vmatprep.subr.mxu0 0.0
    %900 = vmatpush1.msra.mxu0 0.0
    %901 = vmatprep.subr.mxu0 0.0
    %902 = vmatpush1.msra.mxu0 0.0
    %903 = vmatprep.subr.mxu0 0.0
    %904 = vmatpush1.msra.mxu0 0.0
    %905 = vmatprep.subr.mxu0 0.0
    %906 = vmatpush1.msra.mxu0 0.0
    %907 = vmatprep.subr.mxu0 0.0
    %908 = vmatpush1.msra.mxu0 0.0
    %909 = vmatprep.subr.mxu0 0.0
    %910 = vmatpush1.msra.mxu0 0.0
    %911 = vmatprep.subr.mxu0 0.0
    %912 = vmatpush1.msra.mxu0 0.0
    %913 = vmatprep.subr.mxu0 0.0
    %914 = vmatpush1.msra.mxu0 0.0
    %915 = vmatprep.mubr.f32.mxu0 0.0
    %916 = vmatmul.mubr.f32.gmra.mrb[0].mxu0 %v846
    %v917 = vpop.f32.mrb[0].mxu0
    %v918 = vadd.f32 0.0, %v917
    %v919 = vpop.f32.mrb[0].mxu0
    %920 = vmatprep.mubr.f32.mxu0 0.0
    %921 = vmatmul.mubr.f32.gmra.mrb[0].mxu0 %v849
    %v922 = vpop.f32.mrb[0].mxu0
    %v923 = vadd.f32 0.0, %v922
    %v924 = vpop.f32.mrb[0].mxu0
    %925 = vdwg.mxu0
    %928 = vrot.lane.b32.xlu0 %v657, 64
    %v929 = vpop.permute.xlu0 %928
    %930 = vrot.lane.b32.xlu0 %v658, 64
    %v931 = vpop.permute.xlu0 %930
    %v935 = vsel %vm550, %v637, 0
    %v938 = vsel %vm550, %v638, 0
    %940 = vmatprep.subr.mxu0 0.0
    %941 = vmatpush1.msra.mxu0 %v929
    %942 = vmatprep.subr.mxu0 0.0
    %943 = vmatpush1.msra.mxu0 %v931
    %944 = vmatprep.subr.mxu0 0.0
    %945 = vmatpush1.msra.mxu0 0.0
    %946 = vmatprep.subr.mxu0 0.0
    %947 = vmatpush1.msra.mxu0 0.0
    %948 = vmatprep.subr.mxu0 0.0
    %949 = vmatpush1.msra.mxu0 0.0
    %950 = vmatprep.subr.mxu0 0.0
    %951 = vmatpush1.msra.mxu0 0.0
    %952 = vmatprep.subr.mxu0 0.0
    %953 = vmatpush1.msra.mxu0 0.0
    %954 = vmatprep.subr.mxu0 0.0
    %955 = vmatpush1.msra.mxu0 0.0
    %956 = vmatprep.subr.mxu0 0.0
    %957 = vmatpush1.msra.mxu0 0.0
    %958 = vmatprep.subr.mxu0 0.0
    %959 = vmatpush1.msra.mxu0 0.0
    %960 = vmatprep.subr.mxu0 0.0
    %961 = vmatpush1.msra.mxu0 0.0
    %962 = vmatprep.subr.mxu0 0.0
    %963 = vmatpush1.msra.mxu0 0.0
    %964 = vmatprep.subr.mxu0 0.0
    %965 = vmatpush1.msra.mxu0 0.0
    %966 = vmatprep.subr.mxu0 0.0
    %967 = vmatpush1.msra.mxu0 0.0
    %968 = vmatprep.subr.mxu0 0.0
    %969 = vmatpush1.msra.mxu0 0.0
    %970 = vmatprep.subr.mxu0 0.0
    %971 = vmatpush1.msra.mxu0 0.0
    %972 = vmatprep.subr.mxu0 0.0
    %973 = vmatpush1.msra.mxu0 0.0
    %974 = vmatprep.subr.mxu0 0.0
    %975 = vmatpush1.msra.mxu0 0.0
    %976 = vmatprep.subr.mxu0 0.0
    %977 = vmatpush1.msra.mxu0 0.0
    %978 = vmatprep.subr.mxu0 0.0
    %979 = vmatpush1.msra.mxu0 0.0
    %980 = vmatprep.subr.mxu0 0.0
    %981 = vmatpush1.msra.mxu0 0.0
    %982 = vmatprep.subr.mxu0 0.0
    %983 = vmatpush1.msra.mxu0 0.0
    %984 = vmatprep.subr.mxu0 0.0
    %985 = vmatpush1.msra.mxu0 0.0
    %986 = vmatprep.subr.mxu0 0.0
    %987 = vmatpush1.msra.mxu0 0.0
    %988 = vmatprep.subr.mxu0 0.0
    %989 = vmatpush1.msra.mxu0 0.0
    %990 = vmatprep.subr.mxu0 0.0
    %991 = vmatpush1.msra.mxu0 0.0
    %992 = vmatprep.subr.mxu0 0.0
    %993 = vmatpush1.msra.mxu0 0.0
    %994 = vmatprep.subr.mxu0 0.0
    %995 = vmatpush1.msra.mxu0 0.0
    %996 = vmatprep.subr.mxu0 0.0
    %997 = vmatpush1.msra.mxu0 0.0
    %998 = vmatprep.subr.mxu0 0.0
    %999 = vmatpush1.msra.mxu0 0.0
    %1000 = vmatprep.subr.mxu0 0.0
    %1001 = vmatpush1.msra.mxu0 0.0
    %1002 = vmatprep.subr.mxu0 0.0
    %1003 = vmatpush1.msra.mxu0 0.0
    %1004 = vmatprep.mubr.f32.mxu0 0.0
    %1005 = vmatmul.mubr.f32.gmra.mrb[0].mxu0 %v935
    %v1006 = vpop.f32.mrb[0].mxu0
    %v1007 = vadd.f32 0.0, %v1006
    %v1008 = vpop.f32.mrb[0].mxu0
    %1009 = vmatprep.mubr.f32.mxu0 0.0
    %1010 = vmatmul.mubr.f32.gmra.mrb[0].mxu0 %v938
    %v1011 = vpop.f32.mrb[0].mxu0
    %v1012 = vadd.f32 0.0, %v1011
    %v1013 = vpop.f32.mrb[0].mxu0
    %1014 = vdwg.mxu0
    %v1015 = vsel %vm44, %v740, 0.0
    %v1016 = vsel %vm44, %v829, 0.0
    %v1017 = vadd.f32 %v1015, %v1016
    %v1018 = vsel %vm44, %v918, 0.0
    %v1019 = vadd.f32 %v1017, %v1018
    %v1020 = vsel %vm44, %v1007, 0.0
    %v1021 = vadd.f32 %v1019, %v1020
    %v1022 = vsel %vm44, %v745, 0.0
    %v1023 = vsel %vm44, %v834, 0.0
    %v1024 = vadd.f32 %v1022, %v1023
    %v1025 = vsel %vm44, %v923, 0.0
    %v1026 = vadd.f32 %v1024, %v1025
    %v1027 = vsel %vm44, %v1012, 0.0
    %v1028 = vadd.f32 %v1026, %v1027
    %v1029 = vld [vmem:[%s5] sm:$0xff]
    %v1030 = vld [vmem:[%s5 + $0x8] sm:$0xff]
    %v1031 = vld [vmem:[%s5 + $0x10] sm:$0xff]
    %v1032 = vld [vmem:[%s5 + $0x18] sm:$0xff]
    %v1033 = vld [vmem:[%s6] sm:$0x1]
    %v1035 = vlaneseq
    %v1036 = vshrl.u32 %v1035, 7
    %v1037 = vsub.s32 0, %v1036
    %v1038 = vrot.slane %v1033, %v1037
    %v1041 = vsel %vm44, %v1021, 0
    %v1044 = vsel %vm44, %v1028, 0
    %1046 = vmatprep.subr.mxu0 0.0
    %1047 = vmatpush1.msra.mxu0 %v1029
    %1048 = vmatprep.subr.mxu0 0.0
    %1049 = vmatpush1.msra.mxu0 %v1030
    %1050 = vmatprep.subr.mxu0 0.0
    %1051 = vmatpush1.msra.mxu0 %v1031
    %1052 = vmatprep.subr.mxu0 0.0
    %1053 = vmatpush1.msra.mxu0 %v1032
    %1054 = vmatprep.subr.mxu0 0.0
    %1055 = vmatpush1.msra.mxu0 0.0
    %1056 = vmatprep.subr.mxu0 0.0
    %1057 = vmatpush1.msra.mxu0 0.0
    %1058 = vmatprep.subr.mxu0 0.0
    %1059 = vmatpush1.msra.mxu0 0.0
    %1060 = vmatprep.subr.mxu0 0.0
    %1061 = vmatpush1.msra.mxu0 0.0
    %1062 = vmatprep.subr.mxu0 0.0
    %1063 = vmatpush1.msra.mxu0 0.0
    %1064 = vmatprep.subr.mxu0 0.0
    %1065 = vmatpush1.msra.mxu0 0.0
    %1066 = vmatprep.subr.mxu0 0.0
    %1067 = vmatpush1.msra.mxu0 0.0
    %1068 = vmatprep.subr.mxu0 0.0
    %1069 = vmatpush1.msra.mxu0 0.0
    %1070 = vmatprep.subr.mxu0 0.0
    %1071 = vmatpush1.msra.mxu0 0.0
    %1072 = vmatprep.subr.mxu0 0.0
    %1073 = vmatpush1.msra.mxu0 0.0
    %1074 = vmatprep.subr.mxu0 0.0
    %1075 = vmatpush1.msra.mxu0 0.0
    %1076 = vmatprep.subr.mxu0 0.0
    %1077 = vmatpush1.msra.mxu0 0.0
    %1078 = vmatprep.subr.mxu0 0.0
    %1079 = vmatpush1.msra.mxu0 0.0
    %1080 = vmatprep.subr.mxu0 0.0
    %1081 = vmatpush1.msra.mxu0 0.0
    %1082 = vmatprep.subr.mxu0 0.0
    %1083 = vmatpush1.msra.mxu0 0.0
    %1084 = vmatprep.subr.mxu0 0.0
    %1085 = vmatpush1.msra.mxu0 0.0
    %1086 = vmatprep.subr.mxu0 0.0
    %1087 = vmatpush1.msra.mxu0 0.0
    %1088 = vmatprep.subr.mxu0 0.0
    %1089 = vmatpush1.msra.mxu0 0.0
    %1090 = vmatprep.subr.mxu0 0.0
    %1091 = vmatpush1.msra.mxu0 0.0
    %1092 = vmatprep.subr.mxu0 0.0
    %1093 = vmatpush1.msra.mxu0 0.0
    %1094 = vmatprep.subr.mxu0 0.0
    %1095 = vmatpush1.msra.mxu0 0.0
    %1096 = vmatprep.subr.mxu0 0.0
    %1097 = vmatpush1.msra.mxu0 0.0
    %1098 = vmatprep.subr.mxu0 0.0
    %1099 = vmatpush1.msra.mxu0 0.0
    %1100 = vmatprep.subr.mxu0 0.0
    %1101 = vmatpush1.msra.mxu0 0.0
    %1102 = vmatprep.subr.mxu0 0.0
    %1103 = vmatpush1.msra.mxu0 0.0
    %1104 = vmatprep.subr.mxu0 0.0
    %1105 = vmatpush1.msra.mxu0 0.0
    %1106 = vmatprep.subr.mxu0 0.0
    %1107 = vmatpush1.msra.mxu0 0.0
    %1108 = vmatprep.subr.mxu0 0.0
    %1109 = vmatpush1.msra.mxu0 0.0
    %1110 = vmatprep.mubr.f32.mxu0 0.0
    %1111 = vmatmul.mubr.f32.gmra.mrb[0].mxu0 %v1041
    %v1112 = vpop.f32.mrb[0].mxu0
    %v1113 = vadd.f32 %v1038, %v1112
    %v1114 = vpop.f32.mrb[0].mxu0
    %1115 = vmatprep.mubr.f32.mxu0 0.0
    %1116 = vmatmul.mubr.f32.gmra.mrb[0].mxu0 %v1044
    %v1117 = vpop.f32.mrb[0].mxu0
    %v1118 = vadd.f32 %v1038, %v1117
    %v1119 = vpop.f32.mrb[0].mxu0
    %1120 = vdwg.mxu0
    %1121 = vst.msk [vmem:[#allocation2] sm:$0xff] %vm44, %v1113
    %1122 = vst.msk [vmem:[#allocation2 + $0x8] sm:$0xff] %vm44, %v1118
    // Predicated region
    $region30: #{mha_attn.1} parent=1 // pred_check
      _
    $region31: #{mha_attn.1} parent=1 // pred_check_branch
      %1124 = sbr.rel (0) target = $region33
    $region32: #{mha_attn.1} parent=1 // pred_region
      %s1126 = ssub.s32 256, 256
      %1127 = vsyncadd [#allocation3], %s1126
      %s1128 = sshll.u32 [#allocation2], 4
      %s1129 = int_to_ptr.vmem [resolvable:$true] %s1128
      %1134 = dma.vmem_to_hbm [thread:$0]  %s1129, 256, %s7, [#allocation3], 128, 128, 8
    $region33: #{mha_attn.1} parent=1 // pred_fallthru
      _
    // Predicated region
    $region34: #{mha_attn.1} parent=1 // pred_check
      _
    $region35: #{mha_attn.1} parent=1 // pred_check_branch
      %1136 = sbr.rel (0) target = $region37
    $region36: #{mha_attn.1} parent=1 // pred_region
      %1137 = dma.done [#allocation3], 256
    $region37: #{mha_attn.1} parent=1 // pred_fallthru
      _
    %1138 = vsyncpa [#allocation3], 1

</llo_original>
